<compile_context>
chip_gen: v5e
topology: v5e:2x2
jax: 0.10.0
libtpu: 0.0.40
codegen_flags: <defaults>
</compile_context>

<pallas_src>
import functools

import jax
import jax.numpy as jnp
from jax.experimental import pallas as pl
from jax.experimental.pallas import tpu as pltpu


HEAD_LANES = 128  # fused (embedder | bbox_pred | zero-pad) output width


def _round_up(x, m):
    return ((x + m - 1) // m) * m


def roi_head_kernel(x_ref, w6_ref, b6_ref, w7_ref, b7_ref, wh_ref, bh_ref,
                    mask_ref, out_ref):
    """TwoMLPHead (relu(fc6)->relu(fc7)) + fused FastRCNNPredictor for one RoI tile."""
    # --- TwoMLPHead (extended_mlp=False): bf16 operands, fp32 accumulation ---
    h = jnp.dot(x_ref[...], w6_ref[...], preferred_element_type=jnp.float32)
    h = jnp.maximum(h + b6_ref[...], 0.0).astype(jnp.bfloat16)
    h = jnp.dot(h, w7_ref[...], preferred_element_type=jnp.float32)
    h = jnp.maximum(h + b7_ref[...], 0.0).astype(jnp.bfloat16)

    # --- FastRCNNPredictor: embedder (emb_size) and bbox_pred (4) fused into
    #     one 128-lane-wide matmul / unmasked lane-dense store.
    y = jnp.dot(h, wh_ref[...], preferred_element_type=jnp.float32) + bh_ref[...]

    # L2-normalise only the embedding lanes (norm_vectors=True).  mask_ref is a
    # resident [1,128] f32 mask (1.0 on embedding lanes); rsqrt goes to the EUP.
    mask = mask_ref[...]
    sq = y * y * mask
    inv_norm = jax.lax.rsqrt(jnp.sum(sq, axis=-1, keepdims=True) + 1e-12)
    scale = 1.0 + mask * (inv_norm - 1.0)      # inv_norm on emb lanes, 1 elsewhere
    out_ref[...] = y * scale


def make_topdown_rcnn_roi_head(params, *, tile_n=256):
    """Build a jitted RoI-head forward.

    params = (w6, b6, w7, b7, we, be, wb, bb) with weights pre-transposed to
    [in, out] (PyTorch nn.Linear stores [out, in]).

    Returns fwd(pooled[N, C, 7, 7]) -> (embeddings [N, emb], bbox_deltas [N, 4])
    in float32.  All weight packing happens once, here.
    """
    w6, b6, w7, b7, we, be, wb, bb = params
    in_f, repr_size = w6.shape
    emb_size = we.shape[1]
    assert emb_size + 4 <= HEAD_LANES, "fused head exceeds 128 lanes"

    # --- one-time weight packing (resident across the grid) ---
    w6_b = jnp.asarray(w6, jnp.bfloat16)
    w7_b = jnp.asarray(w7, jnp.bfloat16)
    b6_f = jnp.asarray(b6, jnp.float32).reshape(1, repr_size)
    b7_f = jnp.asarray(b7, jnp.float32).reshape(1, repr_size)
    # fused embedder | bbox_pred head, zero-padded to 128 output lanes
    wh = jnp.zeros((repr_size, HEAD_LANES), jnp.bfloat16)
    wh = wh.at[:, :emb_size].set(jnp.asarray(we, jnp.bfloat16))
    wh = wh.at[:, emb_size:emb_size + 4].set(jnp.asarray(wb, jnp.bfloat16))
    bh = jnp.zeros((1, HEAD_LANES), jnp.float32)
    bh = bh.at[:, :emb_size].set(jnp.asarray(be, jnp.float32).reshape(1, -1))
    bh = bh.at[:, emb_size:emb_size + 4].set(jnp.asarray(bb, jnp.float32).reshape(1, -1))
    emb_mask = (jnp.arange(HEAD_LANES) < emb_size).astype(jnp.float32).reshape(1, HEAD_LANES)

    rep = lambda i: (0, 0)  # weights resident across the grid

    @jax.jit
    def fwd(pooled):
        N = pooled.shape[0]
        # torch flatten(start_dim=1) on contiguous NCHW == row-major reshape;
        # single direct cast to bf16 (no f32 round-trip).
        x = pooled.reshape(N, -1).astype(jnp.bfloat16)
        assert x.shape[1] == in_f, "pooled feature width does not match fc6"

        # Row padding only (16-row granularity for bf16 sublane packing); the
        # contraction dim stays at its natural width (full-dim block), so no
        # second full-size padded copy of x is materialized.
        n_min = _round_up(max(N, 16), 16)
        tile = min(tile_n, n_min)
        # v7x has 2 TensorCores: keep >=2 parallel grid steps when there are
        # enough rows (each tile still >=128 so the MXU M dim stays filled).
        if n_min // tile < 2 and n_min >= 256:
            tile = _round_up(pl.cdiv(n_min, 2), 16)
        n_pad = _round_up(n_min, tile)
        if n_pad != N:
            x = jnp.pad(x, ((0, n_pad - N), (0, 0)))

        out = pl.pallas_call(
            roi_head_kernel,
            out_shape=jax.ShapeDtypeStruct((n_pad, HEAD_LANES), jnp.float32),
            grid_spec=pltpu.PrefetchScalarGridSpec(
                num_scalar_prefetch=0,
                grid=(n_pad // tile,),
                in_specs=[
                    pl.BlockSpec((tile, in_f), lambda i: (i, 0)),       # x tile
                    pl.BlockSpec((in_f, repr_size), rep),               # fc6 W (bf16)
                    pl.BlockSpec((1, repr_size), rep),                  # fc6 b (f32)
                    pl.BlockSpec((repr_size, repr_size), rep),          # fc7 W (bf16)
                    pl.BlockSpec((1, repr_size), rep),                  # fc7 b (f32)
                    pl.BlockSpec((repr_size, HEAD_LANES), rep),         # fused head W
                    pl.BlockSpec((1, HEAD_LANES), rep),                 # fused head b
                    pl.BlockSpec((1, HEAD_LANES), rep),                 # emb-lane mask
                ],
                out_specs=pl.BlockSpec((tile, HEAD_LANES), lambda i: (i, 0)),
            ),
            compiler_params=pltpu.CompilerParams(
                dimension_semantics=("parallel",)),
        )(x, w6_b, b6_f, w7_b, b7_f, wh, bh, emb_mask)

        emb = out[:N, :emb_size]
        bbox = out[:N, emb_size:emb_size + 4]
        return emb, bbox

    return fwd


def _reference(pooled, params):
    """Pure-JAX fp32 reference of the same forward pass."""
    w6, b6, w7, b7, we, be, wb, bb = params
    x = pooled.reshape(pooled.shape[0], -1)
    h = jnp.maximum(x @ w6 + b6, 0.0)
    h = jnp.maximum(h @ w7 + b7, 0.0)
    emb = h @ we + be
    emb = emb / jnp.sqrt(jnp.sum(emb * emb, axis=-1, keepdims=True))
    bbox = h @ wb + bb
    return emb, bbox


def _init_linear(key, fan_in, fan_out):
    """Deterministic nn.Linear-style init; weight pre-transposed to [in, out]."""
    kw, kb = jax.random.split(key)
    bound = 1.0 / (fan_in ** 0.5)
    w = jax.random.uniform(kw, (fan_in, fan_out), jnp.float32, -bound, bound)
    b = jax.random.uniform(kb, (1, fan_out), jnp.float32, -bound, bound)
    return w, b


if __name__ == "__main__":
    key = jax.random.PRNGKey(0)
    # Small shapes consistent with the module: 16 RoIs (2 images x 8 proposals),
    # backbone out_channels=16, RoIAlign output 7x7, REPR_SIZE=128, embedding_size=32.
    N, C, R = 16, 16, 7
    REPR, EMB = 128, 32
    in_f = C * R * R

    ks = jax.random.split(key, 5)
    pooled = jax.random.normal(ks[0], (N, C, R, R), jnp.float32)

    w6, b6 = _init_linear(ks[1], in_f, REPR)     # TwoMLPHead.fc6
    w7, b7 = _init_linear(ks[2], REPR, REPR)     # TwoMLPHead.fc7
    we, be = _init_linear(ks[3], REPR, EMB)      # FastRCNNPredictor.embedder
    wb, bb = _init_linear(ks[4], REPR, 4)        # FastRCNNPredictor.bbox_pred
    params = (w6, b6, w7, b7, we, be, wb, bb)

    roi_head = make_topdown_rcnn_roi_head(params)   # one-time weight pre-pack + jit
    emb, bbox = roi_head(pooled)
    jax.block_until_ready((emb, bbox))

    emb_ref, bbox_ref = _reference(pooled, params)
    assert emb.shape == (N, EMB) and bbox.shape == (N, 4)
    # bf16 operands (fp32 accumulation) vs fp32 reference -> looser tolerance.
    assert jnp.allclose(emb, emb_ref, atol=3e-2, rtol=3e-2)
    assert jnp.allclose(bbox, bbox_ref, atol=3e-2, rtol=3e-2)

    print("KERNEL_OK")
</pallas_src>

<mosaic_0001>
module attributes {stable_mosaic.version = 11 : i64} {
  func.func @roi_head_kernel(%arg0: i32, %arg1: memref<16x784xbf16, #tpu.memory_space<vmem>>, %arg2: memref<784x128xbf16, #tpu.memory_space<vmem>>, %arg3: memref<1x128xf32, #tpu.memory_space<vmem>>, %arg4: memref<128x128xbf16, #tpu.memory_space<vmem>>, %arg5: memref<1x128xf32, #tpu.memory_space<vmem>>, %arg6: memref<128x128xbf16, #tpu.memory_space<vmem>>, %arg7: memref<1x128xf32, #tpu.memory_space<vmem>>, %arg8: memref<1x128xf32, #tpu.memory_space<vmem>>, %arg9: memref<16x128xf32, #tpu.memory_space<vmem>>) attributes {dimension_semantics = [#tpu.dimension_semantics<parallel>], iteration_bounds = array<i64: 1>, scalar_prefetch = 0 : i64, scratch_operands = 0 : i64, tpu.core_type = #tpu.core_type<tc>, window_params = [{transform_indices = @transform_0, window_bounds = array<i64: 16, 784>}, {pipeline_mode = #tpu.pipeline_mode<synchronous>, transform_indices = @transform_1, window_bounds = array<i64: 784, 128>}, {pipeline_mode = #tpu.pipeline_mode<synchronous>, transform_indices = @transform_2, window_bounds = array<i64: 1, 128>}, {pipeline_mode = #tpu.pipeline_mode<synchronous>, transform_indices = @transform_3, window_bounds = array<i64: 128, 128>}, {pipeline_mode = #tpu.pipeline_mode<synchronous>, transform_indices = @transform_4, window_bounds = array<i64: 1, 128>}, {pipeline_mode = #tpu.pipeline_mode<synchronous>, transform_indices = @transform_5, window_bounds = array<i64: 128, 128>}, {pipeline_mode = #tpu.pipeline_mode<synchronous>, transform_indices = @transform_6, window_bounds = array<i64: 1, 128>}, {pipeline_mode = #tpu.pipeline_mode<synchronous>, transform_indices = @transform_7, window_bounds = array<i64: 1, 128>}, {transform_indices = @transform_8, window_bounds = array<i64: 16, 128>}]} {
    %c0 = arith.constant 0 : index
    %c0_0 = arith.constant 0 : index
    %0 = vector.load %arg1[%c0, %c0_0] : memref<16x784xbf16, #tpu.memory_space<vmem>>, vector<16x784xbf16>
    %c0_1 = arith.constant 0 : index
    %c0_2 = arith.constant 0 : index
    %1 = vector.load %arg2[%c0_1, %c0_2] : memref<784x128xbf16, #tpu.memory_space<vmem>>, vector<784x128xbf16>
    %cst = arith.constant dense<0.000000e+00> : vector<16x128xf32>
    %2 = tpu.matmul %0, %1, %cst {dimension_numbers = #tpu.dot_dimension_numbers<[1], [0], [0], [1], [0, 0, 1, 1], [], []>} : vector<16x784xbf16>, vector<784x128xbf16>, vector<16x128xf32> -> vector<16x128xf32>
    %c0_3 = arith.constant 0 : index
    %c0_4 = arith.constant 0 : index
    %3 = vector.load %arg3[%c0_3, %c0_4] : memref<1x128xf32, #tpu.memory_space<vmem>>, vector<1x128xf32>
    %4 = vector.broadcast %3 : vector<1x128xf32> to vector<16x128xf32>
    %5 = arith.addf %2, %4 : vector<16x128xf32>
    %cst_5 = arith.constant 0.000000e+00 : f32
    %6 = vector.broadcast %cst_5 : f32 to vector<16x128xf32>
    %7 = arith.maximumf %5, %6 : vector<16x128xf32>
    %8 = arith.truncf %7 : vector<16x128xf32> to vector<16x128xbf16>
    %c0_6 = arith.constant 0 : index
    %c0_7 = arith.constant 0 : index
    %9 = vector.load %arg4[%c0_6, %c0_7] : memref<128x128xbf16, #tpu.memory_space<vmem>>, vector<128x128xbf16>
    %cst_8 = arith.constant dense<0.000000e+00> : vector<16x128xf32>
    %10 = tpu.matmul %8, %9, %cst_8 {dimension_numbers = #tpu.dot_dimension_numbers<[1], [0], [0], [1], [0, 0, 1, 1], [], []>} : vector<16x128xbf16>, vector<128x128xbf16>, vector<16x128xf32> -> vector<16x128xf32>
    %c0_9 = arith.constant 0 : index
    %c0_10 = arith.constant 0 : index
    %11 = vector.load %arg5[%c0_9, %c0_10] : memref<1x128xf32, #tpu.memory_space<vmem>>, vector<1x128xf32>
    %12 = vector.broadcast %11 : vector<1x128xf32> to vector<16x128xf32>
    %13 = arith.addf %10, %12 : vector<16x128xf32>
    %cst_11 = arith.constant 0.000000e+00 : f32
    %14 = vector.broadcast %cst_11 : f32 to vector<16x128xf32>
    %15 = arith.maximumf %13, %14 : vector<16x128xf32>
    %16 = arith.truncf %15 : vector<16x128xf32> to vector<16x128xbf16>
    %c0_12 = arith.constant 0 : index
    %c0_13 = arith.constant 0 : index
    %17 = vector.load %arg6[%c0_12, %c0_13] : memref<128x128xbf16, #tpu.memory_space<vmem>>, vector<128x128xbf16>
    %cst_14 = arith.constant dense<0.000000e+00> : vector<16x128xf32>
    %18 = tpu.matmul %16, %17, %cst_14 {dimension_numbers = #tpu.dot_dimension_numbers<[1], [0], [0], [1], [0, 0, 1, 1], [], []>} : vector<16x128xbf16>, vector<128x128xbf16>, vector<16x128xf32> -> vector<16x128xf32>
    %c0_15 = arith.constant 0 : index
    %c0_16 = arith.constant 0 : index
    %19 = vector.load %arg7[%c0_15, %c0_16] : memref<1x128xf32, #tpu.memory_space<vmem>>, vector<1x128xf32>
    %20 = vector.broadcast %19 : vector<1x128xf32> to vector<16x128xf32>
    %21 = arith.addf %18, %20 : vector<16x128xf32>
    %c0_17 = arith.constant 0 : index
    %c0_18 = arith.constant 0 : index
    %22 = vector.load %arg8[%c0_17, %c0_18] : memref<1x128xf32, #tpu.memory_space<vmem>>, vector<1x128xf32>
    %23 = arith.mulf %21, %21 : vector<16x128xf32>
    %24 = vector.broadcast %22 : vector<1x128xf32> to vector<16x128xf32>
    %25 = arith.mulf %23, %24 : vector<16x128xf32>
    %cst_19 = arith.constant dense<0.000000e+00> : vector<16xf32>
    %26 = vector.multi_reduction <add>, %25, %cst_19 [1] : vector<16x128xf32> to vector<16xf32>
    %27 = vector.shape_cast %26 : vector<16xf32> to vector<16x1xf32>
    %cst_20 = arith.constant 9.99999996E-13 : f32
    %28 = vector.broadcast %cst_20 : f32 to vector<16x1xf32>
    %29 = arith.addf %27, %28 : vector<16x1xf32>
    %30 = math.rsqrt %29 : vector<16x1xf32>
    %cst_21 = arith.constant 1.000000e+00 : f32
    %31 = vector.broadcast %cst_21 : f32 to vector<16x1xf32>
    %32 = arith.subf %30, %31 : vector<16x1xf32>
    %33 = vector.broadcast %22 : vector<1x128xf32> to vector<16x128xf32>
    %34 = vector.broadcast %32 : vector<16x1xf32> to vector<16x128xf32>
    %35 = arith.mulf %33, %34 : vector<16x128xf32>
    %cst_22 = arith.constant 1.000000e+00 : f32
    %36 = vector.broadcast %cst_22 : f32 to vector<16x128xf32>
    %37 = arith.addf %36, %35 : vector<16x128xf32>
    %38 = arith.mulf %21, %37 : vector<16x128xf32>
    %c0_23 = arith.constant 0 : index
    %c0_24 = arith.constant 0 : index
    %39 = vector.load %arg9[%c0_23, %c0_24] : memref<16x128xf32, #tpu.memory_space<vmem>>, vector<16x128xf32>
    tpu.vector_store %arg9[%c0_23, %c0_24], %38 {strides = array<i32>} : memref<16x128xf32, #tpu.memory_space<vmem>>, vector<16x128xf32>,
    return
  }
  func.func @transform_0(%arg0: i32) -> (i32, i32) {
    %c0_i32 = arith.constant 0 : i32
    %c0_i32_0 = arith.constant 0 : i32
    return %arg0, %c0_i32 : i32, i32
  }
  func.func @transform_1(%arg0: i32) -> (i32, i32) {
    %c0_i32 = arith.constant 0 : i32
    %c0_i32_0 = arith.constant 0 : i32
    %c0_i32_1 = arith.constant 0 : i32
    return %c0_i32, %c0_i32_0 : i32, i32
  }
  func.func @transform_2(%arg0: i32) -> (i32, i32) {
    %c0_i32 = arith.constant 0 : i32
    %c0_i32_0 = arith.constant 0 : i32
    %c0_i32_1 = arith.constant 0 : i32
    return %c0_i32, %c0_i32_0 : i32, i32
  }
  func.func @transform_3(%arg0: i32) -> (i32, i32) {
    %c0_i32 = arith.constant 0 : i32
    %c0_i32_0 = arith.constant 0 : i32
    %c0_i32_1 = arith.constant 0 : i32
    return %c0_i32, %c0_i32_0 : i32, i32
  }
  func.func @transform_4(%arg0: i32) -> (i32, i32) {
    %c0_i32 = arith.constant 0 : i32
    %c0_i32_0 = arith.constant 0 : i32
    %c0_i32_1 = arith.constant 0 : i32
    return %c0_i32, %c0_i32_0 : i32, i32
  }
  func.func @transform_5(%arg0: i32) -> (i32, i32) {
    %c0_i32 = arith.constant 0 : i32
    %c0_i32_0 = arith.constant 0 : i32
    %c0_i32_1 = arith.constant 0 : i32
    return %c0_i32, %c0_i32_0 : i32, i32
  }
  func.func @transform_6(%arg0: i32) -> (i32, i32) {
    %c0_i32 = arith.constant 0 : i32
    %c0_i32_0 = arith.constant 0 : i32
    %c0_i32_1 = arith.constant 0 : i32
    return %c0_i32, %c0_i32_0 : i32, i32
  }
  func.func @transform_7(%arg0: i32) -> (i32, i32) {
    %c0_i32 = arith.constant 0 : i32
    %c0_i32_0 = arith.constant 0 : i32
    %c0_i32_1 = arith.constant 0 : i32
    return %c0_i32, %c0_i32_0 : i32, i32
  }
  func.func @transform_8(%arg0: i32) -> (i32, i32) {
    %c0_i32 = arith.constant 0 : i32
    %c0_i32_0 = arith.constant 0 : i32
    return %arg0, %c0_i32 : i32, i32
  }
}

</mosaic_0001>

<llo_original>
// kernel: fwd.1
$region0: #{fwd.1}
  #allocation0 [shape = 'u32[]', space=smem, size = 0x4, offset = 0x4, fixed_abs, tag = 'smem constant byte address 0x4 - core index']
  #allocation1 [shape = 'u32[72,128]{1,0:T(1,128)}', space=vmem, size = 0x9000, scoped, tag = 'internal scratch']
  %s0 = inlined_call_operand.vmem [shape: bf16[16,784], index: 0, kind: input, shape index: {}]
  %s1 = inlined_call_operand.vmem [shape: bf16[784,128], index: 1, kind: input, shape index: {}]
  %s2 = inlined_call_operand.vmem [shape: f32[1,128], index: 2, kind: input, shape index: {}]
  %s3 = inlined_call_operand.vmem [shape: bf16[128,128], index: 3, kind: input, shape index: {}]
  %s4 = inlined_call_operand.vmem [shape: f32[1,128], index: 4, kind: input, shape index: {}]
  %s5 = inlined_call_operand.vmem [shape: bf16[128,128], index: 5, kind: input, shape index: {}]
  %s6 = inlined_call_operand.vmem [shape: f32[1,128], index: 6, kind: input, shape index: {}]
  %s7 = inlined_call_operand.vmem [shape: f32[1,128], index: 7, kind: input, shape index: {}]
  %s8 = inlined_call_operand.vmem [shape: f32[16,128], index: 8, kind: output, shape index: {}]
  %s9 = sld [smem:[#allocation0]]
  $region42: #{fwd.1} parent=0
    _
  %s11 = ssub.s32 1, %s9
  %s12 = scalar_select 0, %s11, %s9
  // Predicated region
  $region2: #{fwd.1} parent=0 // pred_check
    _
  $region3: #{fwd.1} parent=0 // pred_check_branch
    %14 = sbr.rel (0) target = $region5
  $region4: #{fwd.1} parent=0 // pred_region
    _
  $region5: #{fwd.1} parent=0 // pred_fallthru
    _
  // Predicated region
  $region6: #{fwd.1} parent=0 // pred_check
    _
  $region7: #{fwd.1} parent=0 // pred_check_branch
    %16 = sbr.rel (0) target = $region9
  $region8: #{fwd.1} parent=0 // pred_region
    _
  $region9: #{fwd.1} parent=0 // pred_fallthru
    _
  // Predicated region
  $region10: #{fwd.1} parent=0 // pred_check
    _
  $region11: #{fwd.1} parent=0 // pred_check_branch
    %18 = sbr.rel (0) target = $region13
  $region12: #{fwd.1} parent=0 // pred_region
    _
  $region13: #{fwd.1} parent=0 // pred_fallthru
    _
  // Predicated region
  $region14: #{fwd.1} parent=0 // pred_check
    _
  $region15: #{fwd.1} parent=0 // pred_check_branch
    %20 = sbr.rel (0) target = $region17
  $region16: #{fwd.1} parent=0 // pred_region
    _
  $region17: #{fwd.1} parent=0 // pred_fallthru
    _
  // Predicated region
  $region18: #{fwd.1} parent=0 // pred_check
    _
  $region19: #{fwd.1} parent=0 // pred_check_branch
    %22 = sbr.rel (0) target = $region21
  $region20: #{fwd.1} parent=0 // pred_region
    _
  $region21: #{fwd.1} parent=0 // pred_fallthru
    _
  // Predicated region
  $region22: #{fwd.1} parent=0 // pred_check
    _
  $region23: #{fwd.1} parent=0 // pred_check_branch
    %24 = sbr.rel (0) target = $region25
  $region24: #{fwd.1} parent=0 // pred_region
    _
  $region25: #{fwd.1} parent=0 // pred_fallthru
    _
  // Predicated region
  $region26: #{fwd.1} parent=0 // pred_check
    _
  $region27: #{fwd.1} parent=0 // pred_check_branch
    %26 = sbr.rel (0) target = $region29
  $region28: #{fwd.1} parent=0 // pred_region
    _
  $region29: #{fwd.1} parent=0 // pred_fallthru
    _
  // Predicated region
  $region30: #{fwd.1} parent=0 // pred_check
    _
  $region31: #{fwd.1} parent=0 // pred_check_branch
    %28 = sbr.rel (0) target = $region33
  $region32: #{fwd.1} parent=0 // pred_region
    _
  $region33: #{fwd.1} parent=0 // pred_fallthru
    _
  %v30 = vld [vmem:[%s0] sm:$0xff]
  %v31 = vld [vmem:[%s0 + $0x8] sm:$0xff]
  %v32 = vld [vmem:[%s0 + $0x10] sm:$0xff]
  %v33 = vld [vmem:[%s0 + $0x18] sm:$0xf]
  %v34 = vld [vmem:[%s0 + $0x1c] sm:$0xff]
  %v35 = vld [vmem:[%s0 + $0x24] sm:$0xff]
  %v36 = vld [vmem:[%s0 + $0x2c] sm:$0xff]
  %v37 = vld [vmem:[%s0 + $0x34] sm:$0xf]
  %v38 = vld [vmem:[%s1] sm:$0xf]
  %v39 = vld [vmem:[%s1 + $0x4] sm:$0xf]
  %v40 = vld [vmem:[%s1 + $0x8] sm:$0xf]
  %v41 = vld [vmem:[%s1 + $0xc] sm:$0xf]
  %v42 = vld [vmem:[%s1 + $0x10] sm:$0xf]
  %v43 = vld [vmem:[%s1 + $0x14] sm:$0xf]
  %v44 = vld [vmem:[%s1 + $0x18] sm:$0xf]
  %v45 = vld [vmem:[%s1 + $0x1c] sm:$0xf]
  %v46 = vld [vmem:[%s1 + $0x20] sm:$0xf]
  %v47 = vld [vmem:[%s1 + $0x24] sm:$0xf]
  %v48 = vld [vmem:[%s1 + $0x28] sm:$0xf]
  %v49 = vld [vmem:[%s1 + $0x2c] sm:$0xf]
  %v50 = vld [vmem:[%s1 + $0x30] sm:$0xf]
  %v51 = vld [vmem:[%s1 + $0x34] sm:$0xf]
  %v52 = vld [vmem:[%s1 + $0x38] sm:$0xf]
  %v53 = vld [vmem:[%s1 + $0x3c] sm:$0xf]
  %v54 = vld [vmem:[%s1 + $0x40] sm:$0xf]
  %v55 = vld [vmem:[%s1 + $0x44] sm:$0xf]
  %v56 = vld [vmem:[%s1 + $0x48] sm:$0xf]
  %v57 = vld [vmem:[%s1 + $0x4c] sm:$0xf]
  %v58 = vld [vmem:[%s1 + $0x50] sm:$0xf]
  %v59 = vld [vmem:[%s1 + $0x54] sm:$0xf]
  %v60 = vld [vmem:[%s1 + $0x58] sm:$0xf]
  %v61 = vld [vmem:[%s1 + $0x5c] sm:$0xf]
  %v62 = vld [vmem:[%s1 + $0x60] sm:$0xf]
  %v63 = vld [vmem:[%s1 + $0x64] sm:$0xf]
  %v64 = vld [vmem:[%s1 + $0x68] sm:$0xf]
  %v65 = vld [vmem:[%s1 + $0x6c] sm:$0xf]
  %v66 = vld [vmem:[%s1 + $0x70] sm:$0xf]
  %v67 = vld [vmem:[%s1 + $0x74] sm:$0xf]
  %v68 = vld [vmem:[%s1 + $0x78] sm:$0xf]
  %v69 = vld [vmem:[%s1 + $0x7c] sm:$0xf]
  %v70 = vld [vmem:[%s1 + $0x80] sm:$0xf]
  %v71 = vld [vmem:[%s1 + $0x84] sm:$0xf]
  %v72 = vld [vmem:[%s1 + $0x88] sm:$0xf]
  %v73 = vld [vmem:[%s1 + $0x8c] sm:$0xf]
  %v74 = vld [vmem:[%s1 + $0x90] sm:$0xf]
  %v75 = vld [vmem:[%s1 + $0x94] sm:$0xf]
  %v76 = vld [vmem:[%s1 + $0x98] sm:$0xf]
  %v77 = vld [vmem:[%s1 + $0x9c] sm:$0xf]
  %v78 = vld [vmem:[%s1 + $0xa0] sm:$0xf]
  %v79 = vld [vmem:[%s1 + $0xa4] sm:$0xf]
  %v80 = vld [vmem:[%s1 + $0xa8] sm:$0xf]
  %v81 = vld [vmem:[%s1 + $0xac] sm:$0xf]
  %v82 = vld [vmem:[%s1 + $0xb0] sm:$0xf]
  %v83 = vld [vmem:[%s1 + $0xb4] sm:$0xf]
  %v84 = vld [vmem:[%s1 + $0xb8] sm:$0xf]
  %v85 = vld [vmem:[%s1 + $0xbc] sm:$0xf]
  %v86 = vld [vmem:[%s1 + $0xc0] sm:$0xf]
  %v87 = vld [vmem:[%s1 + $0xc4] sm:$0xf]
  %v88 = vld [vmem:[%s1 + $0xc8] sm:$0xf]
  %v89 = vld [vmem:[%s1 + $0xcc] sm:$0xf]
  %v90 = vld [vmem:[%s1 + $0xd0] sm:$0xf]
  %v91 = vld [vmem:[%s1 + $0xd4] sm:$0xf]
  %v92 = vld [vmem:[%s1 + $0xd8] sm:$0xf]
  %v93 = vld [vmem:[%s1 + $0xdc] sm:$0xf]
  %v94 = vld [vmem:[%s1 + $0xe0] sm:$0xf]
  %v95 = vld [vmem:[%s1 + $0xe4] sm:$0xf]
  %v96 = vld [vmem:[%s1 + $0xe8] sm:$0xf]
  %v97 = vld [vmem:[%s1 + $0xec] sm:$0xf]
  %v98 = vld [vmem:[%s1 + $0xf0] sm:$0xf]
  %v99 = vld [vmem:[%s1 + $0xf4] sm:$0xf]
  %v100 = vld [vmem:[%s1 + $0xf8] sm:$0xf]
  %v101 = vld [vmem:[%s1 + $0xfc] sm:$0xf]
  %v102 = vld [vmem:[%s1 + $0x100] sm:$0xf]
  %v103 = vld [vmem:[%s1 + $0x104] sm:$0xf]
  %v104 = vld [vmem:[%s1 + $0x108] sm:$0xf]
  %v105 = vld [vmem:[%s1 + $0x10c] sm:$0xf]
  %v106 = vld [vmem:[%s1 + $0x110] sm:$0xf]
  %v107 = vld [vmem:[%s1 + $0x114] sm:$0xf]
  %v108 = vld [vmem:[%s1 + $0x118] sm:$0xf]
  %v109 = vld [vmem:[%s1 + $0x11c] sm:$0xf]
  %v110 = vld [vmem:[%s1 + $0x120] sm:$0xf]
  %v111 = vld [vmem:[%s1 + $0x124] sm:$0xf]
  %v112 = vld [vmem:[%s1 + $0x128] sm:$0xf]
  %v113 = vld [vmem:[%s1 + $0x12c] sm:$0xf]
  %v114 = vld [vmem:[%s1 + $0x130] sm:$0xf]
  %v115 = vld [vmem:[%s1 + $0x134] sm:$0xf]
  %v116 = vld [vmem:[%s1 + $0x138] sm:$0xf]
  %v117 = vld [vmem:[%s1 + $0x13c] sm:$0xf]
  %v118 = vld [vmem:[%s1 + $0x140] sm:$0xf]
  %v119 = vld [vmem:[%s1 + $0x144] sm:$0xf]
  %v120 = vld [vmem:[%s1 + $0x148] sm:$0xf]
  %v121 = vld [vmem:[%s1 + $0x14c] sm:$0xf]
  %v122 = vld [vmem:[%s1 + $0x150] sm:$0xf]
  %v123 = vld [vmem:[%s1 + $0x154] sm:$0xf]
  %v124 = vld [vmem:[%s1 + $0x158] sm:$0xf]
  %v125 = vld [vmem:[%s1 + $0x15c] sm:$0xf]
  %v126 = vld [vmem:[%s1 + $0x160] sm:$0xf]
  %v127 = vld [vmem:[%s1 + $0x164] sm:$0xf]
  %v128 = vld [vmem:[%s1 + $0x168] sm:$0xf]
  %v129 = vld [vmem:[%s1 + $0x16c] sm:$0xf]
  %v130 = vld [vmem:[%s1 + $0x170] sm:$0xf]
  %v131 = vld [vmem:[%s1 + $0x174] sm:$0xf]
  %v132 = vld [vmem:[%s1 + $0x178] sm:$0xf]
  %v133 = vld [vmem:[%s1 + $0x17c] sm:$0xf]
  %v134 = vld [vmem:[%s1 + $0x180] sm:$0xf]
  %v135 = vld [vmem:[%s1 + $0x184] sm:$0xf]
  %v136 = vld [vmem:[%s2] sm:$0x1]
  %v138 = vperm.slane %v136, 0
  %v148 = vunpack.c.l.b16 %v30
  %v149 = vunpack.c.h.b16 %v30
  %v150 = vunpack.c.l.b16 %v31
  %v151 = vunpack.c.h.b16 %v31
  %v152 = vunpack.c.l.b16 %v32
  %v153 = vunpack.c.h.b16 %v32
  %v154 = vunpack.c.l.b16 %v33
  %v155 = vunpack.c.l.b16 %v34
  %v156 = vunpack.c.h.b16 %v34
  %v157 = vunpack.c.l.b16 %v35
  %v158 = vunpack.c.h.b16 %v35
  %v159 = vunpack.c.l.b16 %v36
  %v160 = vunpack.c.h.b16 %v36
  %v161 = vunpack.c.l.b16 %v37
  %v162 = vpack.c.b16 %v155, %v148
  %v163 = vpack.c.b16 %v156, %v149
  %v164 = vpack.c.b16 %v157, %v150
  %v165 = vpack.c.b16 %v158, %v151
  %v166 = vpack.c.b16 %v159, %v152
  %v167 = vpack.c.b16 %v160, %v153
  %v168 = vpack.c.b16 %v161, %v154
  %v273 = vunpack.c.l.b16 %v38
  %v274 = vunpack.c.l.b16 %v39
  %v275 = vunpack.c.l.b16 %v40
  %v276 = vunpack.c.l.b16 %v41
  %v277 = vunpack.c.l.b16 %v42
  %v278 = vunpack.c.l.b16 %v43
  %v279 = vunpack.c.l.b16 %v44
  %v280 = vunpack.c.l.b16 %v45
  %v281 = vunpack.c.l.b16 %v46
  %v282 = vunpack.c.l.b16 %v47
  %v283 = vunpack.c.l.b16 %v48
  %v284 = vunpack.c.l.b16 %v49
  %v285 = vunpack.c.l.b16 %v50
  %v286 = vunpack.c.l.b16 %v51
  %v287 = vunpack.c.l.b16 %v52
  %v288 = vunpack.c.l.b16 %v53
  %v289 = vunpack.c.l.b16 %v54
  %v290 = vunpack.c.l.b16 %v55
  %v291 = vunpack.c.l.b16 %v56
  %v292 = vunpack.c.l.b16 %v57
  %v293 = vunpack.c.l.b16 %v58
  %v294 = vunpack.c.l.b16 %v59
  %v295 = vunpack.c.l.b16 %v60
  %v296 = vunpack.c.l.b16 %v61
  %v297 = vunpack.c.l.b16 %v62
  %v298 = vunpack.c.l.b16 %v63
  %v299 = vunpack.c.l.b16 %v64
  %v300 = vunpack.c.l.b16 %v65
  %v301 = vunpack.c.l.b16 %v66
  %v302 = vunpack.c.l.b16 %v67
  %v303 = vunpack.c.l.b16 %v68
  %v304 = vunpack.c.l.b16 %v69
  %v305 = vunpack.c.l.b16 %v70
  %v306 = vunpack.c.l.b16 %v71
  %v307 = vunpack.c.l.b16 %v72
  %v308 = vunpack.c.l.b16 %v73
  %v309 = vunpack.c.l.b16 %v74
  %v310 = vunpack.c.l.b16 %v75
  %v311 = vunpack.c.l.b16 %v76
  %v312 = vunpack.c.l.b16 %v77
  %v313 = vunpack.c.l.b16 %v78
  %v314 = vunpack.c.l.b16 %v79
  %v315 = vunpack.c.l.b16 %v80
  %v316 = vunpack.c.l.b16 %v81
  %v317 = vunpack.c.l.b16 %v82
  %v318 = vunpack.c.l.b16 %v83
  %v319 = vunpack.c.l.b16 %v84
  %v320 = vunpack.c.l.b16 %v85
  %v321 = vunpack.c.l.b16 %v86
  %v322 = vunpack.c.l.b16 %v87
  %v323 = vunpack.c.l.b16 %v88
  %v324 = vunpack.c.l.b16 %v89
  %v325 = vunpack.c.l.b16 %v90
  %v326 = vunpack.c.l.b16 %v91
  %v327 = vunpack.c.l.b16 %v92
  %v328 = vunpack.c.l.b16 %v93
  %v329 = vunpack.c.l.b16 %v94
  %v330 = vunpack.c.l.b16 %v95
  %v331 = vunpack.c.l.b16 %v96
  %v332 = vunpack.c.l.b16 %v97
  %v333 = vunpack.c.l.b16 %v98
  %v334 = vunpack.c.l.b16 %v99
  %v335 = vunpack.c.l.b16 %v100
  %v336 = vunpack.c.l.b16 %v101
  %v337 = vunpack.c.l.b16 %v102
  %v338 = vunpack.c.l.b16 %v103
  %v339 = vunpack.c.l.b16 %v104
  %v340 = vunpack.c.l.b16 %v105
  %v341 = vunpack.c.l.b16 %v106
  %v342 = vunpack.c.l.b16 %v107
  %v343 = vunpack.c.l.b16 %v108
  %v344 = vunpack.c.l.b16 %v109
  %v345 = vunpack.c.l.b16 %v110
  %v346 = vunpack.c.l.b16 %v111
  %v347 = vunpack.c.l.b16 %v112
  %v348 = vunpack.c.l.b16 %v113
  %v349 = vunpack.c.l.b16 %v114
  %v350 = vunpack.c.l.b16 %v115
  %v351 = vunpack.c.l.b16 %v116
  %v352 = vunpack.c.l.b16 %v117
  %v353 = vunpack.c.l.b16 %v118
  %v354 = vunpack.c.l.b16 %v119
  %v355 = vunpack.c.l.b16 %v120
  %v356 = vunpack.c.l.b16 %v121
  %v357 = vunpack.c.l.b16 %v122
  %v358 = vunpack.c.l.b16 %v123
  %v359 = vunpack.c.l.b16 %v124
  %v360 = vunpack.c.l.b16 %v125
  %v361 = vunpack.c.l.b16 %v126
  %v362 = vunpack.c.l.b16 %v127
  %v363 = vunpack.c.l.b16 %v128
  %v364 = vunpack.c.l.b16 %v129
  %v365 = vunpack.c.l.b16 %v130
  %v366 = vunpack.c.l.b16 %v131
  %v367 = vunpack.c.l.b16 %v132
  %v368 = vunpack.c.l.b16 %v133
  %v369 = vunpack.c.l.b16 %v134
  %v370 = vunpack.c.l.b16 %v135
  %v371 = vpack.c.b16 %v274, %v273
  %v372 = vpack.c.b16 %v276, %v275
  %v373 = vpack.c.b16 %v278, %v277
  %v374 = vpack.c.b16 %v280, %v279
  %v375 = vpack.c.b16 %v282, %v281
  %v376 = vpack.c.b16 %v284, %v283
  %v377 = vpack.c.b16 %v286, %v285
  %v378 = vpack.c.b16 %v288, %v287
  %v379 = vpack.c.b16 %v290, %v289
  %v380 = vpack.c.b16 %v292, %v291
  %v381 = vpack.c.b16 %v294, %v293
  %v382 = vpack.c.b16 %v296, %v295
  %v383 = vpack.c.b16 %v298, %v297
  %v384 = vpack.c.b16 %v300, %v299
  %v385 = vpack.c.b16 %v302, %v301
  %v386 = vpack.c.b16 %v304, %v303
  %v387 = vpack.c.b16 %v306, %v305
  %v388 = vpack.c.b16 %v308, %v307
  %v389 = vpack.c.b16 %v310, %v309
  %v390 = vpack.c.b16 %v312, %v311
  %v391 = vpack.c.b16 %v314, %v313
  %v392 = vpack.c.b16 %v316, %v315
  %v393 = vpack.c.b16 %v318, %v317
  %v394 = vpack.c.b16 %v320, %v319
  %v395 = vpack.c.b16 %v322, %v321
  %v396 = vpack.c.b16 %v324, %v323
  %v397 = vpack.c.b16 %v326, %v325
  %v398 = vpack.c.b16 %v328, %v327
  %v399 = vpack.c.b16 %v330, %v329
  %v400 = vpack.c.b16 %v332, %v331
  %v401 = vpack.c.b16 %v334, %v333
  %v402 = vpack.c.b16 %v336, %v335
  %v403 = vpack.c.b16 %v338, %v337
  %v404 = vpack.c.b16 %v340, %v339
  %v405 = vpack.c.b16 %v342, %v341
  %v406 = vpack.c.b16 %v344, %v343
  %v407 = vpack.c.b16 %v346, %v345
  %v408 = vpack.c.b16 %v348, %v347
  %v409 = vpack.c.b16 %v350, %v349
  %v410 = vpack.c.b16 %v352, %v351
  %v411 = vpack.c.b16 %v354, %v353
  %v412 = vpack.c.b16 %v356, %v355
  %v413 = vpack.c.b16 %v358, %v357
  %v414 = vpack.c.b16 %v360, %v359
  %v415 = vpack.c.b16 %v362, %v361
  %v416 = vpack.c.b16 %v364, %v363
  %v417 = vpack.c.b16 %v366, %v365
  %v418 = vpack.c.b16 %v368, %v367
  %v419 = vpack.c.b16 %v370, %v369
  %vm469 = vcmask 130048
  %v471 = vsel %vm469, %v168, 0
  %473 = vmatpush.bf16.msra.mxu0 %v378
  %474 = vmatpush.bf16.msra.mxu0 %v377
  %475 = vmatpush.bf16.msra.mxu0 %v376
  %476 = vmatpush.bf16.msra.mxu0 %v375
  %477 = vmatpush.bf16.msra.mxu0 %v374
  %478 = vmatpush.bf16.msra.mxu0 %v373
  %479 = vmatpush.bf16.msra.mxu0 %v372
  %480 = vmatpush.bf16.msra.mxu0 %v371
  %481 = vmatmul.bf16.gmra.mxu0 %v162
  %v482 = vpop.f32.mrf.mxu0
  %v483 = vadd.f32 %v138, %v482
  %v484 = vpop.f32.mrf.mxu0
  %v485 = vadd.f32 %v138, %v484
  %486 = vdwg.mxu0
  %487 = vmatpush.bf16.msra.mxu0 %v386
  %488 = vmatpush.bf16.msra.mxu0 %v385
  %489 = vmatpush.bf16.msra.mxu0 %v384
  %490 = vmatpush.bf16.msra.mxu0 %v383
  %491 = vmatpush.bf16.msra.mxu0 %v382
  %492 = vmatpush.bf16.msra.mxu0 %v381
  %493 = vmatpush.bf16.msra.mxu0 %v380
  %494 = vmatpush.bf16.msra.mxu0 %v379
  %495 = vmatmul.bf16.gmra.mxu0 %v163
  %v496 = vpop.f32.mrf.mxu0
  %v497 = vadd.f32 %v483, %v496
  %v498 = vpop.f32.mrf.mxu0
  %v499 = vadd.f32 %v485, %v498
  %500 = vdwg.mxu0
  %501 = vmatpush.bf16.msra.mxu0 %v394
  %502 = vmatpush.bf16.msra.mxu0 %v393
  %503 = vmatpush.bf16.msra.mxu0 %v392
  %504 = vmatpush.bf16.msra.mxu0 %v391
  %505 = vmatpush.bf16.msra.mxu0 %v390
  %506 = vmatpush.bf16.msra.mxu0 %v389
  %507 = vmatpush.bf16.msra.mxu0 %v388
  %508 = vmatpush.bf16.msra.mxu0 %v387
  %509 = vmatmul.bf16.gmra.mxu0 %v164
  %v510 = vpop.f32.mrf.mxu0
  %v511 = vadd.f32 %v497, %v510
  %v512 = vpop.f32.mrf.mxu0
  %v513 = vadd.f32 %v499, %v512
  %514 = vdwg.mxu0
  %515 = vmatpush.bf16.msra.mxu0 %v402
  %516 = vmatpush.bf16.msra.mxu0 %v401
  %517 = vmatpush.bf16.msra.mxu0 %v400
  %518 = vmatpush.bf16.msra.mxu0 %v399
  %519 = vmatpush.bf16.msra.mxu0 %v398
  %520 = vmatpush.bf16.msra.mxu0 %v397
  %521 = vmatpush.bf16.msra.mxu0 %v396
  %522 = vmatpush.bf16.msra.mxu0 %v395
  %523 = vmatmul.bf16.gmra.mxu0 %v165
  %v524 = vpop.f32.mrf.mxu0
  %v525 = vadd.f32 %v511, %v524
  %v526 = vpop.f32.mrf.mxu0
  %v527 = vadd.f32 %v513, %v526
  %528 = vdwg.mxu0
  %529 = vmatpush.bf16.msra.mxu0 %v410
  %530 = vmatpush.bf16.msra.mxu0 %v409
  %531 = vmatpush.bf16.msra.mxu0 %v408
  %532 = vmatpush.bf16.msra.mxu0 %v407
  %533 = vmatpush.bf16.msra.mxu0 %v406
  %534 = vmatpush.bf16.msra.mxu0 %v405
  %535 = vmatpush.bf16.msra.mxu0 %v404
  %536 = vmatpush.bf16.msra.mxu0 %v403
  %537 = vmatmul.bf16.gmra.mxu0 %v166
  %v538 = vpop.f32.mrf.mxu0
  %v539 = vadd.f32 %v525, %v538
  %v540 = vpop.f32.mrf.mxu0
  %v541 = vadd.f32 %v527, %v540
  %542 = vdwg.mxu0
  %543 = vmatpush.bf16.msra.mxu0 %v418
  %544 = vmatpush.bf16.msra.mxu0 %v417
  %545 = vmatpush.bf16.msra.mxu0 %v416
  %546 = vmatpush.bf16.msra.mxu0 %v415
  %547 = vmatpush.bf16.msra.mxu0 %v414
  %548 = vmatpush.bf16.msra.mxu0 %v413
  %549 = vmatpush.bf16.msra.mxu0 %v412
  %550 = vmatpush.bf16.msra.mxu0 %v411
  %551 = vmatmul.bf16.gmra.mxu0 %v167
  %v552 = vpop.f32.mrf.mxu0
  %v553 = vadd.f32 %v539, %v552
  %v554 = vpop.f32.mrf.mxu0
  %v555 = vadd.f32 %v541, %v554
  %556 = vdwg.mxu0
  %557 = vmatpush.bf16.msra.mxu0 0
  %558 = vmatpush.bf16.msra.mxu0 0
  %559 = vmatpush.bf16.msra.mxu0 0
  %560 = vmatpush.bf16.msra.mxu0 0
  %561 = vmatpush.bf16.msra.mxu0 0
  %562 = vmatpush.bf16.msra.mxu0 0
  %563 = vmatpush.bf16.msra.mxu0 0
  %564 = vmatpush.bf16.msra.mxu0 %v419
  %565 = vmatmul.bf16.gmra.mxu0 %v471
  %v566 = vpop.f32.mrf.mxu0
  %v567 = vadd.f32 %v553, %v566
  %v568 = vpop.f32.mrf.mxu0
  %v569 = vadd.f32 %v555, %v568
  %570 = vdwg.mxu0
  %v571 = vmax.f32 %v567, 0.0
  %v572 = vmax.f32 %v569, 0.0
  %v573 = vpack.c.bf16 %v572, %v571
  %v574 = vld [vmem:[%s3] sm:$0xf]
  %v575 = vld [vmem:[%s3 + $0x4] sm:$0xf]
  %v576 = vld [vmem:[%s3 + $0x8] sm:$0xf]
  %v577 = vld [vmem:[%s3 + $0xc] sm:$0xf]
  %v578 = vld [vmem:[%s3 + $0x10] sm:$0xf]
  %v579 = vld [vmem:[%s3 + $0x14] sm:$0xf]
  %v580 = vld [vmem:[%s3 + $0x18] sm:$0xf]
  %v581 = vld [vmem:[%s3 + $0x1c] sm:$0xf]
  %v582 = vld [vmem:[%s3 + $0x20] sm:$0xf]
  %v583 = vld [vmem:[%s3 + $0x24] sm:$0xf]
  %v584 = vld [vmem:[%s3 + $0x28] sm:$0xf]
  %v585 = vld [vmem:[%s3 + $0x2c] sm:$0xf]
  %v586 = vld [vmem:[%s3 + $0x30] sm:$0xf]
  %v587 = vld [vmem:[%s3 + $0x34] sm:$0xf]
  %v588 = vld [vmem:[%s3 + $0x38] sm:$0xf]
  %v589 = vld [vmem:[%s3 + $0x3c] sm:$0xf]
  %v590 = vld [vmem:[%s4] sm:$0x1]
  %v592 = vperm.slane %v590, 0
  %v610 = vunpack.c.l.b16 %v574
  %v611 = vunpack.c.l.b16 %v575
  %v612 = vunpack.c.l.b16 %v576
  %v613 = vunpack.c.l.b16 %v577
  %v614 = vunpack.c.l.b16 %v578
  %v615 = vunpack.c.l.b16 %v579
  %v616 = vunpack.c.l.b16 %v580
  %v617 = vunpack.c.l.b16 %v581
  %v618 = vunpack.c.l.b16 %v582
  %v619 = vunpack.c.l.b16 %v583
  %v620 = vunpack.c.l.b16 %v584
  %v621 = vunpack.c.l.b16 %v585
  %v622 = vunpack.c.l.b16 %v586
  %v623 = vunpack.c.l.b16 %v587
  %v624 = vunpack.c.l.b16 %v588
  %v625 = vunpack.c.l.b16 %v589
  %v626 = vpack.c.b16 %v611, %v610
  %v627 = vpack.c.b16 %v613, %v612
  %v628 = vpack.c.b16 %v615, %v614
  %v629 = vpack.c.b16 %v617, %v616
  %v630 = vpack.c.b16 %v619, %v618
  %v631 = vpack.c.b16 %v621, %v620
  %v632 = vpack.c.b16 %v623, %v622
  %v633 = vpack.c.b16 %v625, %v624
  %642 = vmatpush.bf16.msra.mxu0 %v633
  %643 = vmatpush.bf16.msra.mxu0 %v632
  %644 = vmatpush.bf16.msra.mxu0 %v631
  %645 = vmatpush.bf16.msra.mxu0 %v630
  %646 = vmatpush.bf16.msra.mxu0 %v629
  %647 = vmatpush.bf16.msra.mxu0 %v628
  %648 = vmatpush.bf16.msra.mxu0 %v627
  %649 = vmatpush.bf16.msra.mxu0 %v626
  %650 = vmatmul.bf16.gmra.mxu0 %v573
  %v651 = vpop.f32.mrf.mxu0
  %v652 = vadd.f32 %v592, %v651
  %v653 = vpop.f32.mrf.mxu0
  %v654 = vadd.f32 %v592, %v653
  %655 = vdwg.mxu0
  %v656 = vmax.f32 %v652, 0.0
  %v657 = vmax.f32 %v654, 0.0
  %v658 = vpack.c.bf16 %v657, %v656
  %v659 = vld [vmem:[%s5] sm:$0xf]
  %v660 = vld [vmem:[%s5 + $0x4] sm:$0xf]
  %v661 = vld [vmem:[%s5 + $0x8] sm:$0xf]
  %v662 = vld [vmem:[%s5 + $0xc] sm:$0xf]
  %v663 = vld [vmem:[%s5 + $0x10] sm:$0xf]
  %v664 = vld [vmem:[%s5 + $0x14] sm:$0xf]
  %v665 = vld [vmem:[%s5 + $0x18] sm:$0xf]
  %v666 = vld [vmem:[%s5 + $0x1c] sm:$0xf]
  %v667 = vld [vmem:[%s5 + $0x20] sm:$0xf]
  %v668 = vld [vmem:[%s5 + $0x24] sm:$0xf]
  %v669 = vld [vmem:[%s5 + $0x28] sm:$0xf]
  %v670 = vld [vmem:[%s5 + $0x2c] sm:$0xf]
  %v671 = vld [vmem:[%s5 + $0x30] sm:$0xf]
  %v672 = vld [vmem:[%s5 + $0x34] sm:$0xf]
  %v673 = vld [vmem:[%s5 + $0x38] sm:$0xf]
  %v674 = vld [vmem:[%s5 + $0x3c] sm:$0xf]
  %v675 = vld [vmem:[%s6] sm:$0x1]
  %v677 = vperm.slane %v675, 0
  %v695 = vunpack.c.l.b16 %v659
  %v696 = vunpack.c.l.b16 %v660
  %v697 = vunpack.c.l.b16 %v661
  %v698 = vunpack.c.l.b16 %v662
  %v699 = vunpack.c.l.b16 %v663
  %v700 = vunpack.c.l.b16 %v664
  %v701 = vunpack.c.l.b16 %v665
  %v702 = vunpack.c.l.b16 %v666
  %v703 = vunpack.c.l.b16 %v667
  %v704 = vunpack.c.l.b16 %v668
  %v705 = vunpack.c.l.b16 %v669
  %v706 = vunpack.c.l.b16 %v670
  %v707 = vunpack.c.l.b16 %v671
  %v708 = vunpack.c.l.b16 %v672
  %v709 = vunpack.c.l.b16 %v673
  %v710 = vunpack.c.l.b16 %v674
  %v711 = vpack.c.b16 %v696, %v695
  %v712 = vpack.c.b16 %v698, %v697
  %v713 = vpack.c.b16 %v700, %v699
  %v714 = vpack.c.b16 %v702, %v701
  %v715 = vpack.c.b16 %v704, %v703
  %v716 = vpack.c.b16 %v706, %v705
  %v717 = vpack.c.b16 %v708, %v707
  %v718 = vpack.c.b16 %v710, %v709
  %727 = vmatpush.bf16.msra.mxu0 %v718
  %728 = vmatpush.bf16.msra.mxu0 %v717
  %729 = vmatpush.bf16.msra.mxu0 %v716
  %730 = vmatpush.bf16.msra.mxu0 %v715
  %731 = vmatpush.bf16.msra.mxu0 %v714
  %732 = vmatpush.bf16.msra.mxu0 %v713
  %733 = vmatpush.bf16.msra.mxu0 %v712
  %734 = vmatpush.bf16.msra.mxu0 %v711
  %735 = vmatmul.bf16.gmra.mxu0 %v658
  %v736 = vpop.f32.mrf.mxu0
  %v737 = vadd.f32 %v677, %v736
  %v738 = vpop.f32.mrf.mxu0
  %v739 = vadd.f32 %v677, %v738
  %740 = vdwg.mxu0
  %v741 = vld [vmem:[%s7] sm:$0x1]
  %v742 = vmul.f32 %v737, %v737
  %v743 = vmul.f32 %v739, %v739
  %v745 = vperm.slane %v741, 0
  %v747 = vmul.f32 %v742, %v745
  %v748 = vmul.f32 %v743, %v745
  %749 = vadd.xlane.f32.xlu0 %v747
  %v750 = vpop.xlane.xlu0 %749
  %751 = vadd.xlane.f32.xlu0 %v748
  %v752 = vpop.xlane.xlu0 %751
  %v753 = vadd.f32 %v750, 1e-12
  %v754 = vadd.f32 %v752, 1e-12
  %v755 = vrsqrt.pop %v753
  %v756 = vmul.f32 %v755, %v753
  %v757 = vmul.f32 %v756, %v755
  %v758 = vmul.f32 0.5, %v757
  %v759 = vsub.f32 1.5, %v758
  %v760 = vmul.f32 %v755, %v759
  %vm761 = vweird.f32 %v753
  %vm762 = vweird.f32 %v755
  %vm763 = vmor %vm761, %vm762
  %v764 = vsel %vm763, %v755, %v760
  %v765 = vrsqrt.pop %v754
  %v766 = vmul.f32 %v765, %v754
  %v767 = vmul.f32 %v766, %v765
  %v768 = vmul.f32 0.5, %v767
  %v769 = vsub.f32 1.5, %v768
  %v770 = vmul.f32 %v765, %v769
  %vm771 = vweird.f32 %v754
  %vm772 = vweird.f32 %v765
  %vm773 = vmor %vm771, %vm772
  %v774 = vsel %vm773, %v765, %v770
  %v775 = vsub.f32 %v764, 1.0
  %v776 = vsub.f32 %v774, 1.0
  %v777 = vmul.f32 %v745, %v775
  %v778 = vmul.f32 %v745, %v776
  %v779 = vadd.f32 %v777, 1.0
  %v780 = vadd.f32 %v778, 1.0
  %v781 = vmul.f32 %v737, %v779
  %v782 = vmul.f32 %v739, %v780
  %783 = vst [vmem:[%s8] sm:$0xff] %v781
  %784 = vst [vmem:[%s8 + $0x8] sm:$0xff] %v782
  // Predicated region
  $region34: #{fwd.1} parent=0 // pred_check
    _
  $region35: #{fwd.1} parent=0 // pred_check_branch
    %786 = sbr.rel (0) target = $region37
  $region36: #{fwd.1} parent=0 // pred_region
    _
  $region37: #{fwd.1} parent=0 // pred_fallthru
    _
  // Predicated region
  $region38: #{fwd.1} parent=0 // pred_check
    _
  $region39: #{fwd.1} parent=0 // pred_check_branch
    %788 = sbr.rel (0) target = $region41
  $region40: #{fwd.1} parent=0 // pred_region
    _
  $region41: #{fwd.1} parent=0 // pred_fallthru
    _

</llo_original>
